<compile_context>
chip_gen: v7x
topology: tpu7x:2x2x1
jax: 0.10.0
libtpu: 0.0.40
codegen_flags: <defaults>
</compile_context>

<pallas_src>
import functools

import jax
import jax.numpy as jnp
from jax.experimental import pallas as pl
from jax.experimental.pallas import tpu as pltpu


def _mlp_kernel(*refs, depth):
    # refs = (x_ref, w1, b1, w2, b2, ..., wd, bd, out_ref)
    x_ref = refs[0]
    out_ref = refs[-1]
    param_refs = refs[1:-1]

    # h : (width_i, tile_N)  -- features on sublanes, N on lanes.
    # Accumulate in f32 regardless of operand dtype: the upcast rides in
    # spare VALU slots of a mem-bound kernel and K = 8..32 makes the MXU
    # work trivial, while bf16 *operands* still halve the HBM bytes.
    h = x_ref[...].astype(jnp.float32)
    for i in range(depth):
        w = param_refs[2 * i][...].astype(jnp.float32)       # (out_i, in_i)
        b = param_refs[2 * i + 1][...].astype(jnp.float32)   # (out_i, 1)
        h = jnp.dot(w, h, preferred_element_type=jnp.float32) + b
        if i < depth - 1:
            # SiLU in f32 (sigmoid -> EUP slot; safe on v5e which lacks bf16
            # EUP).  TODO(synk): if a v7x bundle dump shows EUP saturation,
            # compute the sigmoid in bf16 there to double EUP throughput.
            h = h * jax.nn.sigmoid(h)
    out_ref[...] = h.astype(out_ref.dtype)


def _physical_vmem_bytes():
    """Per-TensorCore VMEM capacity (128 MiB v5e/v6e, 64 MiB v7x).  Falls back
    to the smallest known capacity if the query is unavailable."""
    try:
        info = pltpu.get_tpu_info()
        v = getattr(info, "vmem_capacity_bytes", None)
        if v:
            return int(v)
    except Exception:
        pass
    return 64 << 20  # conservative: v7x per-TC VMEM


def _vmem_bytes(L, width, tile_n, x_bytes, out_bytes):
    """Rough VMEM footprint: double-buffered I/O tiles + (double-buffered)
    resident params + widest live f32 intermediate (2x headroom for spills)."""
    depth = len(width) - 1
    d_out = width[-1]
    tile_in = 2 * L * tile_n * x_bytes
    tile_out = 2 * d_out * tile_n * out_bytes
    params = 2 * sum((width[i + 1] * width[i] + width[i + 1]) * 4
                     for i in range(depth))
    live = 2 * max(width) * tile_n * 4
    return tile_in + tile_out + params + live


def _select_tile_n(N, B, L, width, x_bytes, out_bytes, budget_bytes):
    """Largest 128-multiple divisor of N that fits the VMEM budget.

    Pipelining / megacore already get >= 2 grid steps from the B axis when
    B >= 2, so we take the biggest fitting tile (ideally the full N -> one
    contiguous DMA per step).  Only for B == 1 do we prefer >= 2 steps along
    N so the pipeline (and both v7x TensorCores) have work to overlap."""
    if N % 128 != 0:
        return N  # full-extent block is always layout-legal

    def fits(t):
        return _vmem_bytes(L, width, t, x_bytes, out_bytes) <= budget_bytes

    cands = sorted((c for c in range(128, N + 1, 128) if N % c == 0),
                   reverse=True)
    fitting = [c for c in cands if fits(c)]
    if not fitting:
        return 128
    if B >= 2:
        return fitting[0]
    multi = [c for c in fitting if N // c >= 2]
    return multi[0] if multi else fitting[0]


def mlp_bln_pallas(x, weights, biases, *, tile_n=None, out_dtype=None):
    """Fused MLP over a (B, L, N) input.

    weights[i]: (width[i+1], width[i])  -- PyTorch (out, in) layout
    biases[i]:  (width[i+1], 1)
    Returns (B, width[-1], N), i.e. the PyTorch module's output layout.
    """
    B, L, N = x.shape
    depth = len(weights)
    assert weights[0].shape[1] == L, "width[0] must equal the L axis of x"
    width = [L] + [w.shape[0] for w in weights]
    d_out = width[-1]

    x_bytes = x.dtype.itemsize
    out_dtype = x.dtype if out_dtype is None else jnp.dtype(out_dtype)
    out_bytes = jnp.dtype(out_dtype).itemsize

    # Generation-aware budgets: ~60% of physical VMEM for the working set
    # (~38 MiB on v7x, ~77 MiB on v5e/v6e), leaving headroom for Mosaic
    # internal scratch.
    phys_vmem = _physical_vmem_bytes()
    budget_bytes = int(phys_vmem * 0.6)

    if tile_n is None:
        tile_n = _select_tile_n(N, B, L, width, x_bytes, out_bytes,
                                budget_bytes)
    assert N % tile_n == 0, "N must be divisible by tile_n"
    assert tile_n == N or tile_n % 128 == 0, \
        "tile_n must be a multiple of 128 (or equal the full N)"

    grid = (B, N // tile_n)

    in_specs = [pl.BlockSpec((pl.Squeezed(), L, tile_n), lambda b, n: (b, 0, n))]
    args = [x]
    for w, bvec in zip(weights, biases):
        # Small, grid-invariant parameter blocks: constant index map keeps
        # them resident in VMEM across all grid steps (no re-DMA per step).
        in_specs.append(pl.BlockSpec(w.shape, lambda b, n: (0, 0)))
        in_specs.append(pl.BlockSpec(bvec.shape, lambda b, n: (0, 0)))
        args.append(w)
        args.append(bvec)

    out_spec = pl.BlockSpec((pl.Squeezed(), d_out, tile_n),
                            lambda b, n: (b, 0, n))

    # Advisory cost: K = 8..32 makes the MXU work trivial -> the kernel is
    # HBM-bound on v5e/v6e (and close to EUP/HBM-balanced on v7x).
    rows = B * N
    flops = 2 * rows * sum(width[i] * width[i + 1] for i in range(depth))
    transcendentals = rows * sum(width[1:-1])
    param_bytes = sum(w.size * w.dtype.itemsize + bv.size * bv.dtype.itemsize
                      for w, bv in zip(weights, biases))
    bytes_accessed = x.size * x_bytes + rows * d_out * out_bytes + param_bytes
    cost = pl.CostEstimate(flops=int(flops),
                           transcendentals=int(transcendentals),
                           bytes_accessed=int(bytes_accessed))

    # VMEM limit: enough for the chosen tiles + resident params with headroom,
    # capped at 3/4 of the physical per-TC VMEM of this generation.
    vmem_need = _vmem_bytes(L, width, tile_n, x_bytes, out_bytes)
    vmem_limit = int(min(phys_vmem * 3 // 4, max(32 << 20, vmem_need * 2)))

    kernel = functools.partial(_mlp_kernel, depth=depth)

    return pl.pallas_call(
        kernel,
        out_shape=jax.ShapeDtypeStruct((B, d_out, N), out_dtype),
        grid_spec=pltpu.PrefetchScalarGridSpec(
            num_scalar_prefetch=0,
            grid=grid,
            in_specs=in_specs,
            out_specs=out_spec,
        ),
        compiler_params=pltpu.CompilerParams(
            dimension_semantics=("parallel", "parallel"),
            vmem_limit_bytes=vmem_limit,
        ),
        cost_estimate=cost,
    )(*args)


def mlp_forward(x, weights, biases, *, tile_n=None, operand_dtype=None,
                out_dtype=None):
    """Full MLP_ forward (matches the PyTorch module).

    operand_dtype: optionally cast x / params (e.g. jnp.bfloat16) before the
      kernel to halve HBM traffic on v6e/v7x; accumulation stays f32 in-kernel.
    out_dtype: output dtype (default: the ORIGINAL x dtype, so bf16 operands
      do not silently downcast the module's output).
    """
    orig_dtype = x.dtype
    if out_dtype is None:
        out_dtype = orig_dtype
    if operand_dtype is not None:
        x = x.astype(operand_dtype)
        weights = [w.astype(operand_dtype) for w in weights]
        biases = [b.astype(operand_dtype) for b in biases]

    if x.ndim == 3:
        # (B, L, N): both PyTorch transposes are folded into the kernel's
        # BlockSpecs, so the result is already (B, width[-1], N).
        return mlp_bln_pallas(x, weights, biases, tile_n=tile_n,
                              out_dtype=out_dtype)

    # Generic (non 3-D) path: keep rows on lanes via a single transpose pair.
    orig_shape = x.shape
    x2d = x.reshape(-1, x.shape[-1])                 # (rows, width[0])
    x3 = jnp.transpose(x2d, (1, 0))[None]            # (1, width[0], rows)
    out3 = mlp_bln_pallas(x3, weights, biases, tile_n=tile_n,
                          out_dtype=out_dtype)
    out2 = jnp.transpose(out3[0], (1, 0))            # (rows, width[-1])
    return out2.reshape(*orig_shape[:-1], out2.shape[-1])


def init_params(key, width):
    """PyTorch-style Linear init: uniform(-1/sqrt(fan_in), +1/sqrt(fan_in)).
    Weights kept in PyTorch (out, in) layout; biases as (out, 1) columns."""
    weights, biases = [], []
    depth = len(width) - 1
    keys = jax.random.split(key, 2 * depth)
    for i in range(depth):
        fan_in, fan_out = width[i], width[i + 1]
        bound = 1.0 / jnp.sqrt(fan_in)
        w = jax.random.uniform(keys[2 * i], (fan_out, fan_in),
                               minval=-bound, maxval=bound, dtype=jnp.float32)
        b = jax.random.uniform(keys[2 * i + 1], (fan_out, 1),
                               minval=-bound, maxval=bound, dtype=jnp.float32)
        weights.append(w)
        biases.append(b)
    return weights, biases


def _reference(x, weights, biases):
    """Pure-JAX mirror of the PyTorch forward (weights in (out, in) layout)."""
    reshape = x.ndim == 3
    if reshape:
        B, L, N = x.shape
        x = jnp.transpose(x, (0, 2, 1))
    original_shape = x.shape
    h = x.reshape(-1, x.shape[-1])
    depth = len(weights)
    for i in range(depth):
        h = h @ weights[i].T + biases[i].T
        if i < depth - 1:
            h = h * jax.nn.sigmoid(h)
    if reshape:
        out = jnp.transpose(h.reshape(B, N, -1), (0, 2, 1))
    else:
        out = h.reshape(*original_shape[:-1], h.shape[-1])
    return out


if __name__ == "__main__":
    key = jax.random.PRNGKey(0)
    k_x, k_p = jax.random.split(key)

    # width[0] must match the feature axis L of the (B, L, N) input.
    width = [8, 32, 32, 16]
    B, L, N = 2, width[0], 512   # tile_n auto-selects the full N -> grid (2, 1)

    x = jax.random.normal(k_x, (B, L, N), dtype=jnp.float32)
    weights, biases = init_params(k_p, width)

    # f32 path: bit-for-bit the PyTorch module semantics.
    out = jax.block_until_ready(mlp_forward(x, weights, biases))
    ref = _reference(x, weights, biases)
    assert out.shape == (B, width[-1], N), out.shape
    assert jnp.allclose(out, ref, atol=2e-5, rtol=2e-5), \
        float(jnp.max(jnp.abs(out - ref)))

    # bf16-operand path (halves HBM traffic on v6e/v7x); output stays f32,
    # accumulation stays f32 in-kernel.
    out_bf16 = jax.block_until_ready(
        mlp_forward(x, weights, biases, operand_dtype=jnp.bfloat16))
    assert out_bf16.dtype == jnp.float32, out_bf16.dtype
    assert out_bf16.shape == (B, width[-1], N), out_bf16.shape
    assert jnp.allclose(out_bf16, ref, atol=6e-2, rtol=6e-2), \
        float(jnp.max(jnp.abs(out_bf16 - ref)))

    print("KERNEL_OK")
</pallas_src>

<mosaic_0001>
module attributes {stable_mosaic.version = 11 : i64} {
  func.func @_mlp_kernel(%arg0: i32, %arg1: i32, %arg2: memref<1x8x512xf32, #tpu.memory_space<vmem>>, %arg3: memref<32x8xf32, #tpu.memory_space<vmem>>, %arg4: memref<32x1xf32, #tpu.memory_space<vmem>>, %arg5: memref<32x32xf32, #tpu.memory_space<vmem>>, %arg6: memref<32x1xf32, #tpu.memory_space<vmem>>, %arg7: memref<16x32xf32, #tpu.memory_space<vmem>>, %arg8: memref<16x1xf32, #tpu.memory_space<vmem>>, %arg9: memref<1x16x512xf32, #tpu.memory_space<vmem>>) attributes {dimension_semantics = [#tpu.dimension_semantics<parallel>, #tpu.dimension_semantics<parallel>], iteration_bounds = array<i64: 2, 1>, scalar_prefetch = 0 : i64, scratch_operands = 0 : i64, tpu.core_type = #tpu.core_type<tc>, window_params = [{transform_indices = @transform_0, window_bounds = array<i64: 1, 8, 512>}, {pipeline_mode = #tpu.pipeline_mode<synchronous>, transform_indices = @transform_1, window_bounds = array<i64: 32, 8>}, {pipeline_mode = #tpu.pipeline_mode<synchronous>, transform_indices = @transform_2, window_bounds = array<i64: 32, 1>}, {pipeline_mode = #tpu.pipeline_mode<synchronous>, transform_indices = @transform_3, window_bounds = array<i64: 32, 32>}, {pipeline_mode = #tpu.pipeline_mode<synchronous>, transform_indices = @transform_4, window_bounds = array<i64: 32, 1>}, {pipeline_mode = #tpu.pipeline_mode<synchronous>, transform_indices = @transform_5, window_bounds = array<i64: 16, 32>}, {pipeline_mode = #tpu.pipeline_mode<synchronous>, transform_indices = @transform_6, window_bounds = array<i64: 16, 1>}, {transform_indices = @transform_7, window_bounds = array<i64: 1, 16, 512>}]} {
    %c0 = arith.constant 0 : index
    %c0_0 = arith.constant 0 : index
    %c0_1 = arith.constant 0 : index
    %0 = vector.load %arg2[%c0, %c0_0, %c0_1] : memref<1x8x512xf32, #tpu.memory_space<vmem>>, vector<1x8x512xf32>
    %1 = vector.shape_cast %0 : vector<1x8x512xf32> to vector<8x512xf32>
    %c0_2 = arith.constant 0 : index
    %c0_3 = arith.constant 0 : index
    %2 = vector.load %arg3[%c0_2, %c0_3] : memref<32x8xf32, #tpu.memory_space<vmem>>, vector<32x8xf32>
    %c0_4 = arith.constant 0 : index
    %c0_5 = arith.constant 0 : index
    %3 = vector.load %arg4[%c0_4, %c0_5] : memref<32x1xf32, #tpu.memory_space<vmem>>, vector<32x1xf32>
    %cst = arith.constant dense<0.000000e+00> : vector<32x512xf32>
    %4 = tpu.matmul %2, %1, %cst {dimension_numbers = #tpu.dot_dimension_numbers<[1], [0], [0], [1], [0, 0, 1, 1], [], []>} : vector<32x8xf32>, vector<8x512xf32>, vector<32x512xf32> -> vector<32x512xf32>
    %5 = vector.broadcast %3 : vector<32x1xf32> to vector<32x512xf32>
    %6 = arith.addf %4, %5 : vector<32x512xf32>
    %7 = arith.negf %6 : vector<32x512xf32>
    %8 = math.exp %7 : vector<32x512xf32>
    %cst_6 = arith.constant 1.000000e+00 : f32
    %9 = vector.broadcast %cst_6 : f32 to vector<32x512xf32>
    %10 = arith.addf %9, %8 : vector<32x512xf32>
    %11 = arith.divf %9, %10 : vector<32x512xf32>
    %12 = arith.mulf %6, %11 : vector<32x512xf32>
    %c0_7 = arith.constant 0 : index
    %c0_8 = arith.constant 0 : index
    %13 = vector.load %arg5[%c0_7, %c0_8] : memref<32x32xf32, #tpu.memory_space<vmem>>, vector<32x32xf32>
    %c0_9 = arith.constant 0 : index
    %c0_10 = arith.constant 0 : index
    %14 = vector.load %arg6[%c0_9, %c0_10] : memref<32x1xf32, #tpu.memory_space<vmem>>, vector<32x1xf32>
    %cst_11 = arith.constant dense<0.000000e+00> : vector<32x512xf32>
    %15 = tpu.matmul %13, %12, %cst_11 {dimension_numbers = #tpu.dot_dimension_numbers<[1], [0], [0], [1], [0, 0, 1, 1], [], []>} : vector<32x32xf32>, vector<32x512xf32>, vector<32x512xf32> -> vector<32x512xf32>
    %16 = vector.broadcast %14 : vector<32x1xf32> to vector<32x512xf32>
    %17 = arith.addf %15, %16 : vector<32x512xf32>
    %18 = arith.negf %17 : vector<32x512xf32>
    %19 = math.exp %18 : vector<32x512xf32>
    %cst_12 = arith.constant 1.000000e+00 : f32
    %20 = vector.broadcast %cst_12 : f32 to vector<32x512xf32>
    %21 = arith.addf %20, %19 : vector<32x512xf32>
    %22 = arith.divf %20, %21 : vector<32x512xf32>
    %23 = arith.mulf %17, %22 : vector<32x512xf32>
    %c0_13 = arith.constant 0 : index
    %c0_14 = arith.constant 0 : index
    %24 = vector.load %arg7[%c0_13, %c0_14] : memref<16x32xf32, #tpu.memory_space<vmem>>, vector<16x32xf32>
    %c0_15 = arith.constant 0 : index
    %c0_16 = arith.constant 0 : index
    %25 = vector.load %arg8[%c0_15, %c0_16] : memref<16x1xf32, #tpu.memory_space<vmem>>, vector<16x1xf32>
    %cst_17 = arith.constant dense<0.000000e+00> : vector<16x512xf32>
    %26 = tpu.matmul %24, %23, %cst_17 {dimension_numbers = #tpu.dot_dimension_numbers<[1], [0], [0], [1], [0, 0, 1, 1], [], []>} : vector<16x32xf32>, vector<32x512xf32>, vector<16x512xf32> -> vector<16x512xf32>
    %27 = vector.broadcast %25 : vector<16x1xf32> to vector<16x512xf32>
    %28 = arith.addf %26, %27 : vector<16x512xf32>
    %c0_18 = arith.constant 0 : index
    %c0_19 = arith.constant 0 : index
    %c0_20 = arith.constant 0 : index
    %29 = vector.load %arg9[%c0_18, %c0_19, %c0_20] : memref<1x16x512xf32, #tpu.memory_space<vmem>>, vector<1x16x512xf32>
    %30 = vector.shape_cast %29 : vector<1x16x512xf32> to vector<16x512xf32>
    %31 = vector.shape_cast %28 : vector<16x512xf32> to vector<1x16x512xf32>
    tpu.vector_store %arg9[%c0_18, %c0_19, %c0_20], %31 {strides = array<i32>} : memref<1x16x512xf32, #tpu.memory_space<vmem>>, vector<1x16x512xf32>,
    return
  }
  func.func @transform_0(%arg0: i32, %arg1: i32) -> (i32, i32, i32) {
    %c0_i32 = arith.constant 0 : i32
    %c0_i32_0 = arith.constant 0 : i32
    return %arg0, %c0_i32, %arg1 : i32, i32, i32
  }
  func.func @transform_1(%arg0: i32, %arg1: i32) -> (i32, i32) {
    %c0_i32 = arith.constant 0 : i32
    %c0_i32_0 = arith.constant 0 : i32
    %c0_i32_1 = arith.constant 0 : i32
    return %c0_i32, %c0_i32_0 : i32, i32
  }
  func.func @transform_2(%arg0: i32, %arg1: i32) -> (i32, i32) {
    %c0_i32 = arith.constant 0 : i32
    %c0_i32_0 = arith.constant 0 : i32
    %c0_i32_1 = arith.constant 0 : i32
    return %c0_i32, %c0_i32_0 : i32, i32
  }
  func.func @transform_3(%arg0: i32, %arg1: i32) -> (i32, i32) {
    %c0_i32 = arith.constant 0 : i32
    %c0_i32_0 = arith.constant 0 : i32
    %c0_i32_1 = arith.constant 0 : i32
    return %c0_i32, %c0_i32_0 : i32, i32
  }
  func.func @transform_4(%arg0: i32, %arg1: i32) -> (i32, i32) {
    %c0_i32 = arith.constant 0 : i32
    %c0_i32_0 = arith.constant 0 : i32
    %c0_i32_1 = arith.constant 0 : i32
    return %c0_i32, %c0_i32_0 : i32, i32
  }
  func.func @transform_5(%arg0: i32, %arg1: i32) -> (i32, i32) {
    %c0_i32 = arith.constant 0 : i32
    %c0_i32_0 = arith.constant 0 : i32
    %c0_i32_1 = arith.constant 0 : i32
    return %c0_i32, %c0_i32_0 : i32, i32
  }
  func.func @transform_6(%arg0: i32, %arg1: i32) -> (i32, i32) {
    %c0_i32 = arith.constant 0 : i32
    %c0_i32_0 = arith.constant 0 : i32
    %c0_i32_1 = arith.constant 0 : i32
    return %c0_i32, %c0_i32_0 : i32, i32
  }
  func.func @transform_7(%arg0: i32, %arg1: i32) -> (i32, i32, i32) {
    %c0_i32 = arith.constant 0 : i32
    %c0_i32_0 = arith.constant 0 : i32
    return %arg0, %c0_i32, %arg1 : i32, i32, i32
  }
}

</mosaic_0001>

<llo_original>
// kernel: tpu_custom_call.1
$region0: #{tpu_custom_call.1}
  #allocation0 [shape = 'u32[]', space=smem, size = 0x4, offset = 0x4, fixed_abs, tag = 'smem constant byte address 0x4 - core index']
  #allocation1 [shape = 'u32[144,128]{1,0:T(1,128)}', space=vmem, size = 0x12000, scoped, tag = 'internal scratch']
  %s0 = inlined_call_operand.vmem [shape: f32[2,8,512], index: 0, kind: input, shape index: {}]
  %s1 = inlined_call_operand.vmem [shape: f32[32,8], index: 1, kind: input, shape index: {}]
  %s2 = inlined_call_operand.vmem [shape: f32[32,1], index: 2, kind: input, shape index: {}]
  %s3 = inlined_call_operand.vmem [shape: f32[32,32], index: 3, kind: input, shape index: {}]
  %s4 = inlined_call_operand.vmem [shape: f32[32,1], index: 4, kind: input, shape index: {}]
  %s5 = inlined_call_operand.vmem [shape: f32[16,32], index: 5, kind: input, shape index: {}]
  %s6 = inlined_call_operand.vmem [shape: f32[16,1], index: 6, kind: input, shape index: {}]
  %s7 = inlined_call_operand.hbm [shape: f32[2,16,512], index: 7, kind: output, shape index: {}]
  %s8 = sld [smem:[#allocation0]]
  $region61: #{tpu_custom_call.1} parent=0
    _
  %s10 = ssub.s32 1, %s8
  %s11 = scalar_select 0, %s10, %s8
  $region1: #{tpu_custom_call.1} parent=0
    #allocation2 [shape = 'u8[65536]{0}', space=vmem, size = 0x10000, scoped, tag = 'output window, operand 0']
    #allocation3 [shape = 's32[2]{0}', space=sflag, size = 0x8, scoped, tag = 'scoped memory for tpu_custom_call.1']
    %12 = vsyncpa [#allocation3], 0
    %s13 = scalar_lea.sflag [#allocation3], 1
    %14 = vsyncpa %s13, 0
    loop: start=0, step=1, limit=4
    $region2: #{tpu_custom_call.1} parent=1 // loop_pre_header
      _
    $region3: #{tpu_custom_call.1} parent=1 // loop_header
      %s16 = sphi 0, %s20
      %p17 = scmp.ge.s32.totalorder %s16, 4
      %s23 = sphi 0, %s35
      %s24 = sphi 0, %s31
      %s25 = sphi 0, %s23
      %s26 = sphi 0, %s24
      %s27 = sphi 0, %s25
      %s28 = sphi 0, %s26
      %s40 = sphi 0, %s42
      %s43 = sphi 0, %s40
      %s44 = sphi 0, %s43
      %s60 = sphi 0, %s44
      %s64 = sphi 0, %s64
      %s66 = sphi 0, %s64
      %s67 = sphi 0, %s66
      %s81 = sphi 0, %s67
      %s85 = sphi 0, %s85
      %s87 = sphi 0, %s85
      %s88 = sphi 0, %s87
      %s102 = sphi 0, %s88
      %s106 = sphi 0, %s106
      %s108 = sphi 0, %s106
      %s109 = sphi 0, %s108
      %s123 = sphi 0, %s109
      %s127 = sphi 0, %s127
      %s129 = sphi 0, %s127
      %s130 = sphi 0, %s129
      %s144 = sphi 0, %s130
      %s148 = sphi 0, %s148
      %s150 = sphi 0, %s148
      %s151 = sphi 0, %s150
      %s165 = sphi 0, %s151
      %s169 = sphi 0, %s169
      %s171 = sphi 0, %s169
      %s172 = sphi 0, %s171
      %s186 = sphi 0, %s172
      %s194 = sphi 0, %s196
      %s197 = sphi 0, %s194
      %s198 = sphi 0, %s197
      %s214 = sphi 0, %s198
    $region4: #{tpu_custom_call.1} parent=1 // loop_header_branch
      %19 = sbr.rel (%p17) target = $region8
    $region5: #{tpu_custom_call.1} parent=1 // loop_body
      %s21 = ssub.s32 %s16, 1
      %s22 = ssub.s32 %s16, 2
      %s29 = sadd.s32 1, %s24
      %p30 = scmp.ge.s32.totalorder %s29, 1
      %s31 = scalar_select %p30, 0, %s29
      %s32 = sadd.s32 1, %s23
      %s33 = scalar_select %p30, %s32, %s23
      %p34 = scmp.ge.s32.totalorder %s33, 2
      %s35 = scalar_select %p34, 0, %s33
      %s36 = ssub.s32 %s23, %s35
      %s37 = ssub.s32 %s24, %s31
      %s38 = sor.u32 %s36, %s37
      %p39 = scmp.eq.s32.totalorder %s38, 0
      %s41 = sadd.s32 %s40, 1
      %s42 = scalar_select %p39, %s40, %s41
      %p45 = pneg %p39
      %p46 = scmp.eq.s32.totalorder %s16, 1
      %p47 = por %p45, %p46
      %p48 = scmp.ne.s32.totalorder %s40, %s43
      %p49 = scmp.eq.s32.totalorder %s16, 0
      %p50 = por %p48, %p49
      %p51 = scmp.ne.s32.totalorder %s40, %s43
      %p52 = scmp.eq.s32.totalorder %s21, 1
      %p53 = por %p51, %p52
      %p54 = scmp.ne.s32.totalorder %s43, %s44
      %p55 = scmp.eq.s32.totalorder %s21, 0
      %p56 = por %p54, %p55
      %p57 = scmp.ne.s32.totalorder %s43, %s44
      %p58 = scmp.eq.s32.totalorder %s22, 1
      %p59 = por %p57, %p58
      %p61 = scmp.ne.s32.totalorder %s44, %s60
      %p62 = scmp.eq.s32.totalorder %s22, 0
      %p63 = por %p61, %p62
      %s65 = sadd.s32 %s64, 1
      %p68 = scmp.eq.s32.totalorder %s16, 1
      %p69 = scmp.ne.s32.totalorder %s64, %s66
      %p70 = scmp.eq.s32.totalorder %s16, 0
      %p71 = por %p69, %p70
      %p72 = scmp.ne.s32.totalorder %s64, %s66
      %p73 = scmp.eq.s32.totalorder %s21, 1
      %p74 = por %p72, %p73
      %p75 = scmp.ne.s32.totalorder %s66, %s67
      %p76 = scmp.eq.s32.totalorder %s21, 0
      %p77 = por %p75, %p76
      %p78 = scmp.ne.s32.totalorder %s66, %s67
      %p79 = scmp.eq.s32.totalorder %s22, 1
      %p80 = por %p78, %p79
      %p82 = scmp.ne.s32.totalorder %s67, %s81
      %p83 = scmp.eq.s32.totalorder %s22, 0
      %p84 = por %p82, %p83
      %s86 = sadd.s32 %s85, 1
      %p89 = scmp.eq.s32.totalorder %s16, 1
      %p90 = scmp.ne.s32.totalorder %s85, %s87
      %p91 = scmp.eq.s32.totalorder %s16, 0
      %p92 = por %p90, %p91
      %p93 = scmp.ne.s32.totalorder %s85, %s87
      %p94 = scmp.eq.s32.totalorder %s21, 1
      %p95 = por %p93, %p94
      %p96 = scmp.ne.s32.totalorder %s87, %s88
      %p97 = scmp.eq.s32.totalorder %s21, 0
      %p98 = por %p96, %p97
      %p99 = scmp.ne.s32.totalorder %s87, %s88
      %p100 = scmp.eq.s32.totalorder %s22, 1
      %p101 = por %p99, %p100
      %p103 = scmp.ne.s32.totalorder %s88, %s102
      %p104 = scmp.eq.s32.totalorder %s22, 0
      %p105 = por %p103, %p104
      %s107 = sadd.s32 %s106, 1
      %p110 = scmp.eq.s32.totalorder %s16, 1
      %p111 = scmp.ne.s32.totalorder %s106, %s108
      %p112 = scmp.eq.s32.totalorder %s16, 0
      %p113 = por %p111, %p112
      %p114 = scmp.ne.s32.totalorder %s106, %s108
      %p115 = scmp.eq.s32.totalorder %s21, 1
      %p116 = por %p114, %p115
      %p117 = scmp.ne.s32.totalorder %s108, %s109
      %p118 = scmp.eq.s32.totalorder %s21, 0
      %p119 = por %p117, %p118
      %p120 = scmp.ne.s32.totalorder %s108, %s109
      %p121 = scmp.eq.s32.totalorder %s22, 1
      %p122 = por %p120, %p121
      %p124 = scmp.ne.s32.totalorder %s109, %s123
      %p125 = scmp.eq.s32.totalorder %s22, 0
      %p126 = por %p124, %p125
      %s128 = sadd.s32 %s127, 1
      %p131 = scmp.eq.s32.totalorder %s16, 1
      %p132 = scmp.ne.s32.totalorder %s127, %s129
      %p133 = scmp.eq.s32.totalorder %s16, 0
      %p134 = por %p132, %p133
      %p135 = scmp.ne.s32.totalorder %s127, %s129
      %p136 = scmp.eq.s32.totalorder %s21, 1
      %p137 = por %p135, %p136
      %p138 = scmp.ne.s32.totalorder %s129, %s130
      %p139 = scmp.eq.s32.totalorder %s21, 0
      %p140 = por %p138, %p139
      %p141 = scmp.ne.s32.totalorder %s129, %s130
      %p142 = scmp.eq.s32.totalorder %s22, 1
      %p143 = por %p141, %p142
      %p145 = scmp.ne.s32.totalorder %s130, %s144
      %p146 = scmp.eq.s32.totalorder %s22, 0
      %p147 = por %p145, %p146
      %s149 = sadd.s32 %s148, 1
      %p152 = scmp.eq.s32.totalorder %s16, 1
      %p153 = scmp.ne.s32.totalorder %s148, %s150
      %p154 = scmp.eq.s32.totalorder %s16, 0
      %p155 = por %p153, %p154
      %p156 = scmp.ne.s32.totalorder %s148, %s150
      %p157 = scmp.eq.s32.totalorder %s21, 1
      %p158 = por %p156, %p157
      %p159 = scmp.ne.s32.totalorder %s150, %s151
      %p160 = scmp.eq.s32.totalorder %s21, 0
      %p161 = por %p159, %p160
      %p162 = scmp.ne.s32.totalorder %s150, %s151
      %p163 = scmp.eq.s32.totalorder %s22, 1
      %p164 = por %p162, %p163
      %p166 = scmp.ne.s32.totalorder %s151, %s165
      %p167 = scmp.eq.s32.totalorder %s22, 0
      %p168 = por %p166, %p167
      %s170 = sadd.s32 %s169, 1
      %p173 = scmp.eq.s32.totalorder %s16, 1
      %p174 = scmp.ne.s32.totalorder %s169, %s171
      %p175 = scmp.eq.s32.totalorder %s16, 0
      %p176 = por %p174, %p175
      %p177 = scmp.ne.s32.totalorder %s169, %s171
      %p178 = scmp.eq.s32.totalorder %s21, 1
      %p179 = por %p177, %p178
      %p180 = scmp.ne.s32.totalorder %s171, %s172
      %p181 = scmp.eq.s32.totalorder %s21, 0
      %p182 = por %p180, %p181
      %p183 = scmp.ne.s32.totalorder %s171, %s172
      %p184 = scmp.eq.s32.totalorder %s22, 1
      %p185 = por %p183, %p184
      %p187 = scmp.ne.s32.totalorder %s172, %s186
      %p188 = scmp.eq.s32.totalorder %s22, 0
      %p189 = por %p187, %p188
      %s190 = ssub.s32 %s23, %s35
      %s191 = ssub.s32 %s24, %s31
      %s192 = sor.u32 %s190, %s191
      %p193 = scmp.eq.s32.totalorder %s192, 0
      %s195 = sadd.s32 %s194, 1
      %s196 = scalar_select %p193, %s194, %s195
      %p199 = pneg %p193
      %p200 = scmp.eq.s32.totalorder %s16, 1
      %p201 = por %p199, %p200
      %p202 = scmp.ne.s32.totalorder %s194, %s197
      %p203 = scmp.eq.s32.totalorder %s16, 0
      %p204 = por %p202, %p203
      %p205 = scmp.ne.s32.totalorder %s194, %s197
      %p206 = scmp.eq.s32.totalorder %s21, 1
      %p207 = por %p205, %p206
      %p208 = scmp.ne.s32.totalorder %s197, %s198
      %p209 = scmp.eq.s32.totalorder %s21, 0
      %p210 = por %p208, %p209
      %p211 = scmp.ne.s32.totalorder %s197, %s198
      %p212 = scmp.eq.s32.totalorder %s22, 1
      %p213 = por %p211, %p212
      %p215 = scmp.ne.s32.totalorder %s198, %s214
      %p216 = scmp.eq.s32.totalorder %s22, 0
      %p217 = por %p215, %p216
      %p218 = scmp.le.s32.totalorder 1, %s16
      %p219 = scmp.lt.s32.totalorder %s16, 3
      %p220 = pnand %p218, %p219
      %p221 = pneg %p220
      // Predicated region
      $region9: #{tpu_custom_call.1} parent=5 // pred_check
        _
      $region10: #{tpu_custom_call.1} parent=5 // pred_check_branch
        %223 = sbr.rel (%p220) target = $region12
      $region11: #{tpu_custom_call.1} parent=5 // pred_region
        %s224 = ssub.s32 %s16, 1
        // Predicated region
        $region13: #{tpu_custom_call.1} parent=11 // pred_check
          %p225 = pneg %p77
        $region14: #{tpu_custom_call.1} parent=11 // pred_check_branch
          %227 = sbr.rel (%p225) target = $region16
        $region15: #{tpu_custom_call.1} parent=11 // pred_region
          _
        $region16: #{tpu_custom_call.1} parent=11 // pred_fallthru
          _
        // Predicated region
        $region17: #{tpu_custom_call.1} parent=11 // pred_check
          %p228 = pneg %p98
        $region18: #{tpu_custom_call.1} parent=11 // pred_check_branch
          %230 = sbr.rel (%p228) target = $region20
        $region19: #{tpu_custom_call.1} parent=11 // pred_region
          _
        $region20: #{tpu_custom_call.1} parent=11 // pred_fallthru
          _
        // Predicated region
        $region21: #{tpu_custom_call.1} parent=11 // pred_check
          %p231 = pneg %p119
        $region22: #{tpu_custom_call.1} parent=11 // pred_check_branch
          %233 = sbr.rel (%p231) target = $region24
        $region23: #{tpu_custom_call.1} parent=11 // pred_region
          _
        $region24: #{tpu_custom_call.1} parent=11 // pred_fallthru
          _
        // Predicated region
        $region25: #{tpu_custom_call.1} parent=11 // pred_check
          %p234 = pneg %p140
        $region26: #{tpu_custom_call.1} parent=11 // pred_check_branch
          %236 = sbr.rel (%p234) target = $region28
        $region27: #{tpu_custom_call.1} parent=11 // pred_region
          _
        $region28: #{tpu_custom_call.1} parent=11 // pred_fallthru
          _
        // Predicated region
        $region29: #{tpu_custom_call.1} parent=11 // pred_check
          %p237 = pneg %p161
        $region30: #{tpu_custom_call.1} parent=11 // pred_check_branch
          %239 = sbr.rel (%p237) target = $region32
        $region31: #{tpu_custom_call.1} parent=11 // pred_region
          _
        $region32: #{tpu_custom_call.1} parent=11 // pred_fallthru
          _
        // Predicated region
        $region33: #{tpu_custom_call.1} parent=11 // pred_check
          %p240 = pneg %p182
        $region34: #{tpu_custom_call.1} parent=11 // pred_check_branch
          %242 = sbr.rel (%p240) target = $region36
        $region35: #{tpu_custom_call.1} parent=11 // pred_region
          _
        $region36: #{tpu_custom_call.1} parent=11 // pred_fallthru
          _
      $region12: #{tpu_custom_call.1} parent=5 // pred_fallthru
        _
      %p243 = scmp.lt.s32.totalorder %s16, 2
      // Predicated region
      $region37: #{tpu_custom_call.1} parent=5 // pred_check
        %p244 = pneg %p243
      $region38: #{tpu_custom_call.1} parent=5 // pred_check_branch
        %246 = sbr.rel (%p244) target = $region40
      $region39: #{tpu_custom_call.1} parent=5 // pred_region
        // Predicated region
        $region41: #{tpu_custom_call.1} parent=39 // pred_check
          %p247 = pneg %p50
        $region42: #{tpu_custom_call.1} parent=39 // pred_check_branch
          %249 = sbr.rel (%p247) target = $region44
        $region43: #{tpu_custom_call.1} parent=39 // pred_region
          %s250 = smul.u32 4, %s24
          %p251 = scmp.lt.s32.totalorder %s23, 1
          %s252 = scalar_select %p251, %s23, 1
          %p253 = scmp.lt.s32.totalorder %s250, 3
          %s254 = scalar_select %p253, %s250, 3
          %s255 = smul.addr %s252, 4
          %s256 = sadd.s32 %s254, %s255
          %s257 = smul.addr %s256, 8
          %s258 = scalar_lea.vmem %s0, %s257
          %s259 = smul.u32 4, %s24
        $region44: #{tpu_custom_call.1} parent=39 // pred_fallthru
          _
      $region40: #{tpu_custom_call.1} parent=5 // pred_fallthru
        _
      %p260 = scmp.le.s32.totalorder 1, %s16
      %p261 = scmp.lt.s32.totalorder %s16, 3
      %p262 = pnand %p260, %p261
      %p263 = pneg %p262
      // Predicated region
      $region45: #{tpu_custom_call.1} parent=5 // pred_check
        _
      $region46: #{tpu_custom_call.1} parent=5 // pred_check_branch
        %265 = sbr.rel (%p262) target = $region48
      $region47: #{tpu_custom_call.1} parent=5 // pred_region
        %s266 = ssub.s32 %s16, 1
        %s267 = smul.u32 4, %s26
        %p268 = scmp.lt.s32.totalorder %s25, 1
        %s269 = scalar_select %p268, %s25, 1
        %p270 = scmp.lt.s32.totalorder %s267, 3
        %s271 = scalar_select %p270, %s267, 3
        %s272 = smul.addr %s269, 4
        %s273 = sadd.s32 %s271, %s272
        %s274 = smul.addr %s273, 8
        %s275 = scalar_lea.vmem %s0, %s274
        %p276 = pneg %p56
        %p277 = pneg %p53
        %p278 = pneg %p77
        %p279 = pneg %p74
        %p280 = pneg %p98
        %p281 = pneg %p95
        %p282 = pneg %p119
        %p283 = pneg %p116
        %p284 = pneg %p140
        %p285 = pneg %p137
        %p286 = pneg %p161
        %p287 = pneg %p158
        %p288 = pneg %p182
        %p289 = pneg %p179
        %p290 = pneg %p210
        %p291 = pneg %p207
        %s292 = sand.u32 %s197, 1
        %s293 = scalar_lea.sflag [#allocation3], %s292
        %s294 = sand.u32 %s197, 1
        %s295 = smul.addr %s294, 64
        %s296 = scalar_lea.vmem [#allocation2], %s295
        %s297 = smul.u32 4, %s26
        %p298 = scmp.lt.s32.totalorder %s25, 1
        %s299 = scalar_select %p298, %s25, 1
        %p300 = scmp.lt.s32.totalorder %s297, 3
        %s301 = scalar_select %p300, %s297, 3
        %s302 = smul.addr %s299, 4
        %s303 = sadd.s32 %s301, %s302
        %s304 = smul.addr %s303, 8
        %s305 = scalar_lea.vmem %s0, %s304
        %s306 = smul.u32 4, %s26
        %s307 = smul.u32 4, %s26
        %v308 = vld [vmem:[%s305] sm:$0xff]
        %v309 = vld [vmem:[%s305 + $0x8] sm:$0xff]
        %v310 = vld [vmem:[%s305 + $0x10] sm:$0xff]
        %v311 = vld [vmem:[%s305 + $0x18] sm:$0xff]
        %v312 = vld [vmem:[%s1] sm:$0xff]
        %v313 = vld [vmem:[%s1 + $0x8] sm:$0xff]
        %v314 = vld [vmem:[%s1 + $0x10] sm:$0xff]
        %v315 = vld [vmem:[%s1 + $0x18] sm:$0xff]
        %v316 = vld [vmem:[%s2] sm:$0xff]
        %v317 = vld [vmem:[%s2 + $0x8] sm:$0xff]
        %v318 = vld [vmem:[%s2 + $0x10] sm:$0xff]
        %v319 = vld [vmem:[%s2 + $0x18] sm:$0xff]
        %321 = vset.pattern.permute.xlu0 0
        %322 = vperm.xlu0 %321, %v316
        %v323 = vpop.permute.xlu0 %322
        %326 = vset.pattern.permute.xlu0 0
        %327 = vperm.xlu0 %326, %v317
        %v328 = vpop.permute.xlu0 %327
        %331 = vset.pattern.permute.xlu0 0
        %332 = vperm.xlu0 %331, %v318
        %v333 = vpop.permute.xlu0 %332
        %336 = vset.pattern.permute.xlu0 0
        %337 = vperm.xlu0 %336, %v319
        %v338 = vpop.permute.xlu0 %337
        %vm340 = vcmask 64512
        %v342 = vsel %vm340, %v312, 0
        %v345 = vsel %vm340, %v313, 0
        %v348 = vsel %vm340, %v314, 0
        %v351 = vsel %vm340, %v315, 0
        %353 = vmatprep.subr.mxu0 %v309
        %354 = vmatpush1.msra.mxu0 %v308
        %355 = vmatprep.subr.mxu0 0.0
        %356 = vmatpush1.msra.mxu0 0.0
        %357 = vmatprep.subr.mxu0 0.0
        %358 = vmatpush1.msra.mxu0 0.0
        %359 = vmatprep.subr.mxu0 0.0
        %360 = vmatpush1.msra.mxu0 0.0
        %361 = vmatprep.subr.mxu0 0.0
        %362 = vmatpush1.msra.mxu0 0.0
        %363 = vmatprep.subr.mxu0 0.0
        %364 = vmatpush1.msra.mxu0 0.0
        %365 = vmatprep.subr.mxu0 0.0
        %366 = vmatpush1.msra.mxu0 0.0
        %367 = vmatprep.subr.mxu0 0.0
        %368 = vmatpush1.msra.mxu0 0.0
        %369 = vmatprep.subr.mxu0 0.0
        %370 = vmatpush1.msra.mxu0 0.0
        %371 = vmatprep.subr.mxu0 0.0
        %372 = vmatpush1.msra.mxu0 0.0
        %373 = vmatprep.subr.mxu0 0.0
        %374 = vmatpush1.msra.mxu0 0.0
        %375 = vmatprep.subr.mxu0 0.0
        %376 = vmatpush1.msra.mxu0 0.0
        %377 = vmatprep.subr.mxu0 0.0
        %378 = vmatpush1.msra.mxu0 0.0
        %379 = vmatprep.subr.mxu0 0.0
        %380 = vmatpush1.msra.mxu0 0.0
        %381 = vmatprep.subr.mxu0 0.0
        %382 = vmatpush1.msra.mxu0 0.0
        %383 = vmatprep.subr.mxu0 0.0
        %384 = vmatpush1.msra.mxu0 0.0
        %385 = vmatprep.subr.mxu0 0.0
        %386 = vmatpush1.msra.mxu0 0.0
        %387 = vmatprep.subr.mxu0 0.0
        %388 = vmatpush1.msra.mxu0 0.0
        %389 = vmatprep.subr.mxu0 0.0
        %390 = vmatpush1.msra.mxu0 0.0
        %391 = vmatprep.subr.mxu0 0.0
        %392 = vmatpush1.msra.mxu0 0.0
        %393 = vmatprep.subr.mxu0 0.0
        %394 = vmatpush1.msra.mxu0 0.0
        %395 = vmatprep.subr.mxu0 0.0
        %396 = vmatpush1.msra.mxu0 0.0
        %397 = vmatprep.subr.mxu0 0.0
        %398 = vmatpush1.msra.mxu0 0.0
        %399 = vmatprep.subr.mxu0 0.0
        %400 = vmatpush1.msra.mxu0 0.0
        %401 = vmatprep.subr.mxu0 0.0
        %402 = vmatpush1.msra.mxu0 0.0
        %403 = vmatprep.subr.mxu0 0.0
        %404 = vmatpush1.msra.mxu0 0.0
        %405 = vmatprep.subr.mxu0 0.0
        %406 = vmatpush1.msra.mxu0 0.0
        %407 = vmatprep.subr.mxu0 0.0
        %408 = vmatpush1.msra.mxu0 0.0
        %409 = vmatprep.subr.mxu0 0.0
        %410 = vmatpush1.msra.mxu0 0.0
        %411 = vmatprep.subr.mxu0 0.0
        %412 = vmatpush1.msra.mxu0 0.0
        %413 = vmatprep.subr.mxu0 0.0
        %414 = vmatpush1.msra.mxu0 0.0
        %415 = vmatprep.subr.mxu0 0.0
        %416 = vmatpush1.msra.mxu0 0.0
        %417 = vmatprep.mubr.f32.mxu0 0.0
        %418 = vmatmul.mubr.f32.gmra.mrb[0].mxu0 %v342
        %v419 = vpop.f32.mrb[0].mxu0
        %v420 = vadd.f32 %v323, %v419
        %v421 = vpop.f32.mrb[0].mxu0
        %v422 = vadd.f32 %v323, %v421
        %423 = vmatprep.mubr.f32.mxu0 0.0
        %424 = vmatmul.mubr.f32.gmra.mrb[0].mxu0 %v345
        %v425 = vpop.f32.mrb[0].mxu0
        %v426 = vadd.f32 %v328, %v425
        %v427 = vpop.f32.mrb[0].mxu0
        %v428 = vadd.f32 %v328, %v427
        %429 = vmatprep.mubr.f32.mxu0 0.0
        %430 = vmatmul.mubr.f32.gmra.mrb[0].mxu0 %v348
        %v431 = vpop.f32.mrb[0].mxu0
        %v432 = vadd.f32 %v333, %v431
        %v433 = vpop.f32.mrb[0].mxu0
        %v434 = vadd.f32 %v333, %v433
        %435 = vmatprep.mubr.f32.mxu0 0.0
        %436 = vmatmul.mubr.f32.gmra.mrb[0].mxu0 %v351
        %v437 = vpop.f32.mrb[0].mxu0
        %v438 = vadd.f32 %v338, %v437
        %v439 = vpop.f32.mrb[0].mxu0
        %v440 = vadd.f32 %v338, %v439
        %441 = vdwg.mxu0
        %442 = vmatprep.subr.mxu0 %v311
        %443 = vmatpush1.msra.mxu0 %v310
        %444 = vmatprep.subr.mxu0 0.0
        %445 = vmatpush1.msra.mxu0 0.0
        %446 = vmatprep.subr.mxu0 0.0
        %447 = vmatpush1.msra.mxu0 0.0
        %448 = vmatprep.subr.mxu0 0.0
        %449 = vmatpush1.msra.mxu0 0.0
        %450 = vmatprep.subr.mxu0 0.0
        %451 = vmatpush1.msra.mxu0 0.0
        %452 = vmatprep.subr.mxu0 0.0
        %453 = vmatpush1.msra.mxu0 0.0
        %454 = vmatprep.subr.mxu0 0.0
        %455 = vmatpush1.msra.mxu0 0.0
        %456 = vmatprep.subr.mxu0 0.0
        %457 = vmatpush1.msra.mxu0 0.0
        %458 = vmatprep.subr.mxu0 0.0
        %459 = vmatpush1.msra.mxu0 0.0
        %460 = vmatprep.subr.mxu0 0.0
        %461 = vmatpush1.msra.mxu0 0.0
        %462 = vmatprep.subr.mxu0 0.0
        %463 = vmatpush1.msra.mxu0 0.0
        %464 = vmatprep.subr.mxu0 0.0
        %465 = vmatpush1.msra.mxu0 0.0
        %466 = vmatprep.subr.mxu0 0.0
        %467 = vmatpush1.msra.mxu0 0.0
        %468 = vmatprep.subr.mxu0 0.0
        %469 = vmatpush1.msra.mxu0 0.0
        %470 = vmatprep.subr.mxu0 0.0
        %471 = vmatpush1.msra.mxu0 0.0
        %472 = vmatprep.subr.mxu0 0.0
        %473 = vmatpush1.msra.mxu0 0.0
        %474 = vmatprep.subr.mxu0 0.0
        %475 = vmatpush1.msra.mxu0 0.0
        %476 = vmatprep.subr.mxu0 0.0
        %477 = vmatpush1.msra.mxu0 0.0
        %478 = vmatprep.subr.mxu0 0.0
        %479 = vmatpush1.msra.mxu0 0.0
        %480 = vmatprep.subr.mxu0 0.0
        %481 = vmatpush1.msra.mxu0 0.0
        %482 = vmatprep.subr.mxu0 0.0
        %483 = vmatpush1.msra.mxu0 0.0
        %484 = vmatprep.subr.mxu0 0.0
        %485 = vmatpush1.msra.mxu0 0.0
        %486 = vmatprep.subr.mxu0 0.0
        %487 = vmatpush1.msra.mxu0 0.0
        %488 = vmatprep.subr.mxu0 0.0
        %489 = vmatpush1.msra.mxu0 0.0
        %490 = vmatprep.subr.mxu0 0.0
        %491 = vmatpush1.msra.mxu0 0.0
        %492 = vmatprep.subr.mxu0 0.0
        %493 = vmatpush1.msra.mxu0 0.0
        %494 = vmatprep.subr.mxu0 0.0
        %495 = vmatpush1.msra.mxu0 0.0
        %496 = vmatprep.subr.mxu0 0.0
        %497 = vmatpush1.msra.mxu0 0.0
        %498 = vmatprep.subr.mxu0 0.0
        %499 = vmatpush1.msra.mxu0 0.0
        %500 = vmatprep.subr.mxu0 0.0
        %501 = vmatpush1.msra.mxu0 0.0
        %502 = vmatprep.subr.mxu0 0.0
        %503 = vmatpush1.msra.mxu0 0.0
        %504 = vmatprep.subr.mxu0 0.0
        %505 = vmatpush1.msra.mxu0 0.0
        %506 = vmatprep.mubr.f32.mxu0 0.0
        %507 = vmatmul.mubr.f32.gmra.mrb[0].mxu0 %v342
        %v508 = vpop.f32.mrb[0].mxu0
        %v509 = vadd.f32 %v323, %v508
        %v510 = vpop.f32.mrb[0].mxu0
        %v511 = vadd.f32 %v323, %v510
        %512 = vmatprep.mubr.f32.mxu0 0.0
        %513 = vmatmul.mubr.f32.gmra.mrb[0].mxu0 %v345
        %v514 = vpop.f32.mrb[0].mxu0
        %v515 = vadd.f32 %v328, %v514
        %v516 = vpop.f32.mrb[0].mxu0
        %v517 = vadd.f32 %v328, %v516
        %518 = vmatprep.mubr.f32.mxu0 0.0
        %519 = vmatmul.mubr.f32.gmra.mrb[0].mxu0 %v348
        %v520 = vpop.f32.mrb[0].mxu0
        %v521 = vadd.f32 %v333, %v520
        %v522 = vpop.f32.mrb[0].mxu0
        %v523 = vadd.f32 %v333, %v522
        %524 = vmatprep.mubr.f32.mxu0 0.0
        %525 = vmatmul.mubr.f32.gmra.mrb[0].mxu0 %v351
        %v526 = vpop.f32.mrb[0].mxu0
        %v527 = vadd.f32 %v338, %v526
        %v528 = vpop.f32.mrb[0].mxu0
        %v529 = vadd.f32 %v338, %v528
        %530 = vdwg.mxu0
        %v531 = vxor.u32 %v420, 2147483648
        %v532 = vxor.u32 %v422, 2147483648
        %v533 = vxor.u32 %v509, 2147483648
        %v534 = vxor.u32 %v511, 2147483648
        %v535 = vxor.u32 %v426, 2147483648
        %v536 = vxor.u32 %v428, 2147483648
        %v537 = vxor.u32 %v515, 2147483648
        %v538 = vxor.u32 %v517, 2147483648
        %v539 = vxor.u32 %v432, 2147483648
        %v540 = vxor.u32 %v434, 2147483648
        %v541 = vxor.u32 %v521, 2147483648
        %v542 = vxor.u32 %v523, 2147483648
        %v543 = vxor.u32 %v438, 2147483648
        %v544 = vxor.u32 %v440, 2147483648
        %v545 = vxor.u32 %v527, 2147483648
        %v546 = vxor.u32 %v529, 2147483648
        %v547 = vmul.f32 %v531, 1.442695
        %v548 = vpow.pop %v547
        %v549 = vmul.f32 %v532, 1.442695
        %v550 = vpow.pop %v549
        %v551 = vmul.f32 %v533, 1.442695
        %v552 = vpow.pop %v551
        %v553 = vmul.f32 %v534, 1.442695
        %v554 = vpow.pop %v553
        %v555 = vmul.f32 %v535, 1.442695
        %v556 = vpow.pop %v555
        %v557 = vmul.f32 %v536, 1.442695
        %v558 = vpow.pop %v557
        %v559 = vmul.f32 %v537, 1.442695
        %v560 = vpow.pop %v559
        %v561 = vmul.f32 %v538, 1.442695
        %v562 = vpow.pop %v561
        %v563 = vmul.f32 %v539, 1.442695
        %v564 = vpow.pop %v563
        %v565 = vmul.f32 %v540, 1.442695
        %v566 = vpow.pop %v565
        %v567 = vmul.f32 %v541, 1.442695
        %v568 = vpow.pop %v567
        %v569 = vmul.f32 %v542, 1.442695
        %v570 = vpow.pop %v569
        %v571 = vmul.f32 %v543, 1.442695
        %v572 = vpow.pop %v571
        %v573 = vmul.f32 %v544, 1.442695
        %v574 = vpow.pop %v573
        %v575 = vmul.f32 %v545, 1.442695
        %v576 = vpow.pop %v575
        %v577 = vmul.f32 %v546, 1.442695
        %v578 = vpow.pop %v577
        %v579 = vadd.f32 %v548, 1.0
        %v580 = vadd.f32 %v550, 1.0
        %v581 = vadd.f32 %v552, 1.0
        %v582 = vadd.f32 %v554, 1.0
        %v583 = vadd.f32 %v556, 1.0
        %v584 = vadd.f32 %v558, 1.0
        %v585 = vadd.f32 %v560, 1.0
        %v586 = vadd.f32 %v562, 1.0
        %v587 = vadd.f32 %v564, 1.0
        %v588 = vadd.f32 %v566, 1.0
        %v589 = vadd.f32 %v568, 1.0
        %v590 = vadd.f32 %v570, 1.0
        %v591 = vadd.f32 %v572, 1.0
        %v592 = vadd.f32 %v574, 1.0
        %v593 = vadd.f32 %v576, 1.0
        %v594 = vadd.f32 %v578, 1.0
        %v595 = vrcp.pop %v579
        %v596 = vmul.f32 1.0, %v595
        %v597 = vrcp.pop %v580
        %v598 = vmul.f32 1.0, %v597
        %v599 = vrcp.pop %v581
        %v600 = vmul.f32 1.0, %v599
        %v601 = vrcp.pop %v582
        %v602 = vmul.f32 1.0, %v601
        %v603 = vrcp.pop %v583
        %v604 = vmul.f32 1.0, %v603
        %v605 = vrcp.pop %v584
        %v606 = vmul.f32 1.0, %v605
        %v607 = vrcp.pop %v585
        %v608 = vmul.f32 1.0, %v607
        %v609 = vrcp.pop %v586
        %v610 = vmul.f32 1.0, %v609
        %v611 = vrcp.pop %v587
        %v612 = vmul.f32 1.0, %v611
        %v613 = vrcp.pop %v588
        %v614 = vmul.f32 1.0, %v613
        %v615 = vrcp.pop %v589
        %v616 = vmul.f32 1.0, %v615
        %v617 = vrcp.pop %v590
        %v618 = vmul.f32 1.0, %v617
        %v619 = vrcp.pop %v591
        %v620 = vmul.f32 1.0, %v619
        %v621 = vrcp.pop %v592
        %v622 = vmul.f32 1.0, %v621
        %v623 = vrcp.pop %v593
        %v624 = vmul.f32 1.0, %v623
        %v625 = vrcp.pop %v594
        %v626 = vmul.f32 1.0, %v625
        %v627 = vmul.f32 %v420, %v596
        %v628 = vmul.f32 %v422, %v598
        %v629 = vmul.f32 %v509, %v600
        %v630 = vmul.f32 %v511, %v602
        %v631 = vmul.f32 %v426, %v604
        %v632 = vmul.f32 %v428, %v606
        %v633 = vmul.f32 %v515, %v608
        %v634 = vmul.f32 %v517, %v610
        %v635 = vmul.f32 %v432, %v612
        %v636 = vmul.f32 %v434, %v614
        %v637 = vmul.f32 %v521, %v616
        %v638 = vmul.f32 %v523, %v618
        %v639 = vmul.f32 %v438, %v620
        %v640 = vmul.f32 %v440, %v622
        %v641 = vmul.f32 %v527, %v624
        %v642 = vmul.f32 %v529, %v626
        %v643 = vld [vmem:[%s3] sm:$0xff]
        %v644 = vld [vmem:[%s3 + $0x8] sm:$0xff]
        %v645 = vld [vmem:[%s3 + $0x10] sm:$0xff]
        %v646 = vld [vmem:[%s3 + $0x18] sm:$0xff]
        %v647 = vld [vmem:[%s4] sm:$0xff]
        %v648 = vld [vmem:[%s4 + $0x8] sm:$0xff]
        %v649 = vld [vmem:[%s4 + $0x10] sm:$0xff]
        %v650 = vld [vmem:[%s4 + $0x18] sm:$0xff]
        %652 = vset.pattern.permute.xlu0 0
        %653 = vperm.xlu0 %652, %v647
        %v654 = vpop.permute.xlu0 %653
        %657 = vset.pattern.permute.xlu0 0
        %658 = vperm.xlu0 %657, %v648
        %v659 = vpop.permute.xlu0 %658
        %662 = vset.pattern.permute.xlu0 0
        %663 = vperm.xlu0 %662, %v649
        %v664 = vpop.permute.xlu0 %663
        %667 = vset.pattern.permute.xlu0 0
        %668 = vperm.xlu0 %667, %v650
        %v669 = vpop.permute.xlu0 %668
        %vm671 = vcmask 261120
        %v673 = vsel %vm671, %v643, 0
        %v676 = vsel %vm671, %v644, 0
        %v679 = vsel %vm671, %v645, 0
        %v682 = vsel %vm671, %v646, 0
        %684 = vmatprep.subr.mxu0 %v628
        %685 = vmatpush1.msra.mxu0 %v627
        %686 = vmatprep.subr.mxu0 %v632
        %687 = vmatpush1.msra.mxu0 %v631
        %688 = vmatprep.subr.mxu0 %v636
        %689 = vmatpush1.msra.mxu0 %v635
        %690 = vmatprep.subr.mxu0 %v640
        %691 = vmatpush1.msra.mxu0 %v639
        %692 = vmatprep.subr.mxu0 0.0
        %693 = vmatpush1.msra.mxu0 0.0
        %694 = vmatprep.subr.mxu0 0.0
        %695 = vmatpush1.msra.mxu0 0.0
        %696 = vmatprep.subr.mxu0 0.0
        %697 = vmatpush1.msra.mxu0 0.0
        %698 = vmatprep.subr.mxu0 0.0
        %699 = vmatpush1.msra.mxu0 0.0
        %700 = vmatprep.subr.mxu0 0.0
        %701 = vmatpush1.msra.mxu0 0.0
        %702 = vmatprep.subr.mxu0 0.0
        %703 = vmatpush1.msra.mxu0 0.0
        %704 = vmatprep.subr.mxu0 0.0
        %705 = vmatpush1.msra.mxu0 0.0
        %706 = vmatprep.subr.mxu0 0.0
        %707 = vmatpush1.msra.mxu0 0.0
        %708 = vmatprep.subr.mxu0 0.0
        %709 = vmatpush1.msra.mxu0 0.0
        %710 = vmatprep.subr.mxu0 0.0
        %711 = vmatpush1.msra.mxu0 0.0
        %712 = vmatprep.subr.mxu0 0.0
        %713 = vmatpush1.msra.mxu0 0.0
        %714 = vmatprep.subr.mxu0 0.0
        %715 = vmatpush1.msra.mxu0 0.0
        %716 = vmatprep.subr.mxu0 0.0
        %717 = vmatpush1.msra.mxu0 0.0
        %718 = vmatprep.subr.mxu0 0.0
        %719 = vmatpush1.msra.mxu0 0.0
        %720 = vmatprep.subr.mxu0 0.0
        %721 = vmatpush1.msra.mxu0 0.0
        %722 = vmatprep.subr.mxu0 0.0
        %723 = vmatpush1.msra.mxu0 0.0
        %724 = vmatprep.subr.mxu0 0.0
        %725 = vmatpush1.msra.mxu0 0.0
        %726 = vmatprep.subr.mxu0 0.0
        %727 = vmatpush1.msra.mxu0 0.0
        %728 = vmatprep.subr.mxu0 0.0
        %729 = vmatpush1.msra.mxu0 0.0
        %730 = vmatprep.subr.mxu0 0.0
        %731 = vmatpush1.msra.mxu0 0.0
        %732 = vmatprep.subr.mxu0 0.0
        %733 = vmatpush1.msra.mxu0 0.0
        %734 = vmatprep.subr.mxu0 0.0
        %735 = vmatpush1.msra.mxu0 0.0
        %736 = vmatprep.subr.mxu0 0.0
        %737 = vmatpush1.msra.mxu0 0.0
        %738 = vmatprep.subr.mxu0 0.0
        %739 = vmatpush1.msra.mxu0 0.0
        %740 = vmatprep.subr.mxu0 0.0
        %741 = vmatpush1.msra.mxu0 0.0
        %742 = vmatprep.subr.mxu0 0.0
        %743 = vmatpush1.msra.mxu0 0.0
        %744 = vmatprep.subr.mxu0 0.0
        %745 = vmatpush1.msra.mxu0 0.0
        %746 = vmatprep.subr.mxu0 0.0
        %747 = vmatpush1.msra.mxu0 0.0
        %748 = vmatprep.mubr.f32.mxu0 0.0
        %749 = vmatmul.mubr.f32.gmra.mrb[0].mxu0 %v673
        %v750 = vpop.f32.mrb[0].mxu0
        %v751 = vadd.f32 %v654, %v750
        %v752 = vpop.f32.mrb[0].mxu0
        %v753 = vadd.f32 %v654, %v752
        %754 = vmatprep.mubr.f32.mxu0 0.0
        %755 = vmatmul.mubr.f32.gmra.mrb[0].mxu0 %v676
        %v756 = vpop.f32.mrb[0].mxu0
        %v757 = vadd.f32 %v659, %v756
        %v758 = vpop.f32.mrb[0].mxu0
        %v759 = vadd.f32 %v659, %v758
        %760 = vmatprep.mubr.f32.mxu0 0.0
        %761 = vmatmul.mubr.f32.gmra.mrb[0].mxu0 %v679
        %v762 = vpop.f32.mrb[0].mxu0
        %v763 = vadd.f32 %v664, %v762
        %v764 = vpop.f32.mrb[0].mxu0
        %v765 = vadd.f32 %v664, %v764
        %766 = vmatprep.mubr.f32.mxu0 0.0
        %767 = vmatmul.mubr.f32.gmra.mrb[0].mxu0 %v682
        %v768 = vpop.f32.mrb[0].mxu0
        %v769 = vadd.f32 %v669, %v768
        %v770 = vpop.f32.mrb[0].mxu0
        %v771 = vadd.f32 %v669, %v770
        %772 = vdwg.mxu0
        %773 = vmatprep.subr.mxu0 %v630
        %774 = vmatpush1.msra.mxu0 %v629
        %775 = vmatprep.subr.mxu0 %v634
        %776 = vmatpush1.msra.mxu0 %v633
        %777 = vmatprep.subr.mxu0 %v638
        %778 = vmatpush1.msra.mxu0 %v637
        %779 = vmatprep.subr.mxu0 %v642
        %780 = vmatpush1.msra.mxu0 %v641
        %781 = vmatprep.subr.mxu0 0.0
        %782 = vmatpush1.msra.mxu0 0.0
        %783 = vmatprep.subr.mxu0 0.0
        %784 = vmatpush1.msra.mxu0 0.0
        %785 = vmatprep.subr.mxu0 0.0
        %786 = vmatpush1.msra.mxu0 0.0
        %787 = vmatprep.subr.mxu0 0.0
        %788 = vmatpush1.msra.mxu0 0.0
        %789 = vmatprep.subr.mxu0 0.0
        %790 = vmatpush1.msra.mxu0 0.0
        %791 = vmatprep.subr.mxu0 0.0
        %792 = vmatpush1.msra.mxu0 0.0
        %793 = vmatprep.subr.mxu0 0.0
        %794 = vmatpush1.msra.mxu0 0.0
        %795 = vmatprep.subr.mxu0 0.0
        %796 = vmatpush1.msra.mxu0 0.0
        %797 = vmatprep.subr.mxu0 0.0
        %798 = vmatpush1.msra.mxu0 0.0
        %799 = vmatprep.subr.mxu0 0.0
        %800 = vmatpush1.msra.mxu0 0.0
        %801 = vmatprep.subr.mxu0 0.0
        %802 = vmatpush1.msra.mxu0 0.0
        %803 = vmatprep.subr.mxu0 0.0
        %804 = vmatpush1.msra.mxu0 0.0
        %805 = vmatprep.subr.mxu0 0.0
        %806 = vmatpush1.msra.mxu0 0.0
        %807 = vmatprep.subr.mxu0 0.0
        %808 = vmatpush1.msra.mxu0 0.0
        %809 = vmatprep.subr.mxu0 0.0
        %810 = vmatpush1.msra.mxu0 0.0
        %811 = vmatprep.subr.mxu0 0.0
        %812 = vmatpush1.msra.mxu0 0.0
        %813 = vmatprep.subr.mxu0 0.0
        %814 = vmatpush1.msra.mxu0 0.0
        %815 = vmatprep.subr.mxu0 0.0
        %816 = vmatpush1.msra.mxu0 0.0
        %817 = vmatprep.subr.mxu0 0.0
        %818 = vmatpush1.msra.mxu0 0.0
        %819 = vmatprep.subr.mxu0 0.0
        %820 = vmatpush1.msra.mxu0 0.0
        %821 = vmatprep.subr.mxu0 0.0
        %822 = vmatpush1.msra.mxu0 0.0
        %823 = vmatprep.subr.mxu0 0.0
        %824 = vmatpush1.msra.mxu0 0.0
        %825 = vmatprep.subr.mxu0 0.0
        %826 = vmatpush1.msra.mxu0 0.0
        %827 = vmatprep.subr.mxu0 0.0
        %828 = vmatpush1.msra.mxu0 0.0
        %829 = vmatprep.subr.mxu0 0.0
        %830 = vmatpush1.msra.mxu0 0.0
        %831 = vmatprep.subr.mxu0 0.0
        %832 = vmatpush1.msra.mxu0 0.0
        %833 = vmatprep.subr.mxu0 0.0
        %834 = vmatpush1.msra.mxu0 0.0
        %835 = vmatprep.subr.mxu0 0.0
        %836 = vmatpush1.msra.mxu0 0.0
        %837 = vmatprep.mubr.f32.mxu0 0.0
        %838 = vmatmul.mubr.f32.gmra.mrb[0].mxu0 %v673
        %v839 = vpop.f32.mrb[0].mxu0
        %v840 = vadd.f32 %v654, %v839
        %v841 = vpop.f32.mrb[0].mxu0
        %v842 = vadd.f32 %v654, %v841
        %843 = vmatprep.mubr.f32.mxu0 0.0
        %844 = vmatmul.mubr.f32.gmra.mrb[0].mxu0 %v676
        %v845 = vpop.f32.mrb[0].mxu0
        %v846 = vadd.f32 %v659, %v845
        %v847 = vpop.f32.mrb[0].mxu0
        %v848 = vadd.f32 %v659, %v847
        %849 = vmatprep.mubr.f32.mxu0 0.0
        %850 = vmatmul.mubr.f32.gmra.mrb[0].mxu0 %v679
        %v851 = vpop.f32.mrb[0].mxu0
        %v852 = vadd.f32 %v664, %v851
        %v853 = vpop.f32.mrb[0].mxu0
        %v854 = vadd.f32 %v664, %v853
        %855 = vmatprep.mubr.f32.mxu0 0.0
        %856 = vmatmul.mubr.f32.gmra.mrb[0].mxu0 %v682
        %v857 = vpop.f32.mrb[0].mxu0
        %v858 = vadd.f32 %v669, %v857
        %v859 = vpop.f32.mrb[0].mxu0
        %v860 = vadd.f32 %v669, %v859
        %861 = vdwg.mxu0
        %v862 = vxor.u32 %v751, 2147483648
        %v863 = vxor.u32 %v753, 2147483648
        %v864 = vxor.u32 %v840, 2147483648
        %v865 = vxor.u32 %v842, 2147483648
        %v866 = vxor.u32 %v757, 2147483648
        %v867 = vxor.u32 %v759, 2147483648
        %v868 = vxor.u32 %v846, 2147483648
        %v869 = vxor.u32 %v848, 2147483648
        %v870 = vxor.u32 %v763, 2147483648
        %v871 = vxor.u32 %v765, 2147483648
        %v872 = vxor.u32 %v852, 2147483648
        %v873 = vxor.u32 %v854, 2147483648
        %v874 = vxor.u32 %v769, 2147483648
        %v875 = vxor.u32 %v771, 2147483648
        %v876 = vxor.u32 %v858, 2147483648
        %v877 = vxor.u32 %v860, 2147483648
        %v878 = vmul.f32 %v862, 1.442695
        %v879 = vpow.pop %v878
        %v880 = vmul.f32 %v863, 1.442695
        %v881 = vpow.pop %v880
        %v882 = vmul.f32 %v864, 1.442695
        %v883 = vpow.pop %v882
        %v884 = vmul.f32 %v865, 1.442695
        %v885 = vpow.pop %v884
        %v886 = vmul.f32 %v866, 1.442695
        %v887 = vpow.pop %v886
        %v888 = vmul.f32 %v867, 1.442695
        %v889 = vpow.pop %v888
        %v890 = vmul.f32 %v868, 1.442695
        %v891 = vpow.pop %v890
        %v892 = vmul.f32 %v869, 1.442695
        %v893 = vpow.pop %v892
        %v894 = vmul.f32 %v870, 1.442695
        %v895 = vpow.pop %v894
        %v896 = vmul.f32 %v871, 1.442695
        %v897 = vpow.pop %v896
        %v898 = vmul.f32 %v872, 1.442695
        %v899 = vpow.pop %v898
        %v900 = vmul.f32 %v873, 1.442695
        %v901 = vpow.pop %v900
        %v902 = vmul.f32 %v874, 1.442695
        %v903 = vpow.pop %v902
        %v904 = vmul.f32 %v875, 1.442695
        %v905 = vpow.pop %v904
        %v906 = vmul.f32 %v876, 1.442695
        %v907 = vpow.pop %v906
        %v908 = vmul.f32 %v877, 1.442695
        %v909 = vpow.pop %v908
        %v910 = vadd.f32 %v879, 1.0
        %v911 = vadd.f32 %v881, 1.0
        %v912 = vadd.f32 %v883, 1.0
        %v913 = vadd.f32 %v885, 1.0
        %v914 = vadd.f32 %v887, 1.0
        %v915 = vadd.f32 %v889, 1.0
        %v916 = vadd.f32 %v891, 1.0
        %v917 = vadd.f32 %v893, 1.0
        %v918 = vadd.f32 %v895, 1.0
        %v919 = vadd.f32 %v897, 1.0
        %v920 = vadd.f32 %v899, 1.0
        %v921 = vadd.f32 %v901, 1.0
        %v922 = vadd.f32 %v903, 1.0
        %v923 = vadd.f32 %v905, 1.0
        %v924 = vadd.f32 %v907, 1.0
        %v925 = vadd.f32 %v909, 1.0
        %v926 = vrcp.pop %v910
        %v927 = vmul.f32 1.0, %v926
        %v928 = vrcp.pop %v911
        %v929 = vmul.f32 1.0, %v928
        %v930 = vrcp.pop %v912
        %v931 = vmul.f32 1.0, %v930
        %v932 = vrcp.pop %v913
        %v933 = vmul.f32 1.0, %v932
        %v934 = vrcp.pop %v914
        %v935 = vmul.f32 1.0, %v934
        %v936 = vrcp.pop %v915
        %v937 = vmul.f32 1.0, %v936
        %v938 = vrcp.pop %v916
        %v939 = vmul.f32 1.0, %v938
        %v940 = vrcp.pop %v917
        %v941 = vmul.f32 1.0, %v940
        %v942 = vrcp.pop %v918
        %v943 = vmul.f32 1.0, %v942
        %v944 = vrcp.pop %v919
        %v945 = vmul.f32 1.0, %v944
        %v946 = vrcp.pop %v920
        %v947 = vmul.f32 1.0, %v946
        %v948 = vrcp.pop %v921
        %v949 = vmul.f32 1.0, %v948
        %v950 = vrcp.pop %v922
        %v951 = vmul.f32 1.0, %v950
        %v952 = vrcp.pop %v923
        %v953 = vmul.f32 1.0, %v952
        %v954 = vrcp.pop %v924
        %v955 = vmul.f32 1.0, %v954
        %v956 = vrcp.pop %v925
        %v957 = vmul.f32 1.0, %v956
        %v958 = vmul.f32 %v751, %v927
        %v959 = vmul.f32 %v753, %v929
        %v960 = vmul.f32 %v840, %v931
        %v961 = vmul.f32 %v842, %v933
        %v962 = vmul.f32 %v757, %v935
        %v963 = vmul.f32 %v759, %v937
        %v964 = vmul.f32 %v846, %v939
        %v965 = vmul.f32 %v848, %v941
        %v966 = vmul.f32 %v763, %v943
        %v967 = vmul.f32 %v765, %v945
        %v968 = vmul.f32 %v852, %v947
        %v969 = vmul.f32 %v854, %v949
        %v970 = vmul.f32 %v769, %v951
        %v971 = vmul.f32 %v771, %v953
        %v972 = vmul.f32 %v858, %v955
        %v973 = vmul.f32 %v860, %v957
        %v974 = vld [vmem:[%s5] sm:$0xff]
        %v975 = vld [vmem:[%s5 + $0x8] sm:$0xff]
        %v976 = vld [vmem:[%s6] sm:$0xff]
        %v977 = vld [vmem:[%s6 + $0x8] sm:$0xff]
        %979 = vset.pattern.permute.xlu0 0
        %980 = vperm.xlu0 %979, %v976
        %v981 = vpop.permute.xlu0 %980
        %984 = vset.pattern.permute.xlu0 0
        %985 = vperm.xlu0 %984, %v977
        %v986 = vpop.permute.xlu0 %985
        %v989 = vsel %vm671, %v974, 0
        %v992 = vsel %vm671, %v975, 0
        %994 = vmatprep.subr.mxu0 %v959
        %995 = vmatpush1.msra.mxu0 %v958
        %996 = vmatprep.subr.mxu0 %v963
        %997 = vmatpush1.msra.mxu0 %v962
        %998 = vmatprep.subr.mxu0 %v967
        %999 = vmatpush1.msra.mxu0 %v966
        %1000 = vmatprep.subr.mxu0 %v971
        %1001 = vmatpush1.msra.mxu0 %v970
        %1002 = vmatprep.subr.mxu0 0.0
        %1003 = vmatpush1.msra.mxu0 0.0
        %1004 = vmatprep.subr.mxu0 0.0
        %1005 = vmatpush1.msra.mxu0 0.0
        %1006 = vmatprep.subr.mxu0 0.0
        %1007 = vmatpush1.msra.mxu0 0.0
        %1008 = vmatprep.subr.mxu0 0.0
        %1009 = vmatpush1.msra.mxu0 0.0
        %1010 = vmatprep.subr.mxu0 0.0
        %1011 = vmatpush1.msra.mxu0 0.0
        %1012 = vmatprep.subr.mxu0 0.0
        %1013 = vmatpush1.msra.mxu0 0.0
        %1014 = vmatprep.subr.mxu0 0.0
        %1015 = vmatpush1.msra.mxu0 0.0
        %1016 = vmatprep.subr.mxu0 0.0
        %1017 = vmatpush1.msra.mxu0 0.0
        %1018 = vmatprep.subr.mxu0 0.0
        %1019 = vmatpush1.msra.mxu0 0.0
        %1020 = vmatprep.subr.mxu0 0.0
        %1021 = vmatpush1.msra.mxu0 0.0
        %1022 = vmatprep.subr.mxu0 0.0
        %1023 = vmatpush1.msra.mxu0 0.0
        %1024 = vmatprep.subr.mxu0 0.0
        %1025 = vmatpush1.msra.mxu0 0.0
        %1026 = vmatprep.subr.mxu0 0.0
        %1027 = vmatpush1.msra.mxu0 0.0
        %1028 = vmatprep.subr.mxu0 0.0
        %1029 = vmatpush1.msra.mxu0 0.0
        %1030 = vmatprep.subr.mxu0 0.0
        %1031 = vmatpush1.msra.mxu0 0.0
        %1032 = vmatprep.subr.mxu0 0.0
        %1033 = vmatpush1.msra.mxu0 0.0
        %1034 = vmatprep.subr.mxu0 0.0
        %1035 = vmatpush1.msra.mxu0 0.0
        %1036 = vmatprep.subr.mxu0 0.0
        %1037 = vmatpush1.msra.mxu0 0.0
        %1038 = vmatprep.subr.mxu0 0.0
        %1039 = vmatpush1.msra.mxu0 0.0
        %1040 = vmatprep.subr.mxu0 0.0
        %1041 = vmatpush1.msra.mxu0 0.0
        %1042 = vmatprep.subr.mxu0 0.0
        %1043 = vmatpush1.msra.mxu0 0.0
        %1044 = vmatprep.subr.mxu0 0.0
        %1045 = vmatpush1.msra.mxu0 0.0
        %1046 = vmatprep.subr.mxu0 0.0
        %1047 = vmatpush1.msra.mxu0 0.0
        %1048 = vmatprep.subr.mxu0 0.0
        %1049 = vmatpush1.msra.mxu0 0.0
        %1050 = vmatprep.subr.mxu0 0.0
        %1051 = vmatpush1.msra.mxu0 0.0
        %1052 = vmatprep.subr.mxu0 0.0
        %1053 = vmatpush1.msra.mxu0 0.0
        %1054 = vmatprep.subr.mxu0 0.0
        %1055 = vmatpush1.msra.mxu0 0.0
        %1056 = vmatprep.subr.mxu0 0.0
        %1057 = vmatpush1.msra.mxu0 0.0
        %1058 = vmatprep.mubr.f32.mxu0 0.0
        %1059 = vmatmul.mubr.f32.gmra.mrb[0].mxu0 %v989
        %v1060 = vpop.f32.mrb[0].mxu0
        %v1061 = vadd.f32 %v981, %v1060
        %v1062 = vpop.f32.mrb[0].mxu0
        %v1063 = vadd.f32 %v981, %v1062
        %1064 = vmatprep.mubr.f32.mxu0 0.0
        %1065 = vmatmul.mubr.f32.gmra.mrb[0].mxu0 %v992
        %v1066 = vpop.f32.mrb[0].mxu0
        %v1067 = vadd.f32 %v986, %v1066
        %v1068 = vpop.f32.mrb[0].mxu0
        %v1069 = vadd.f32 %v986, %v1068
        %1070 = vdwg.mxu0
        %1071 = vmatprep.subr.mxu0 %v961
        %1072 = vmatpush1.msra.mxu0 %v960
        %1073 = vmatprep.subr.mxu0 %v965
        %1074 = vmatpush1.msra.mxu0 %v964
        %1075 = vmatprep.subr.mxu0 %v969
        %1076 = vmatpush1.msra.mxu0 %v968
        %1077 = vmatprep.subr.mxu0 %v973
        %1078 = vmatpush1.msra.mxu0 %v972
        %1079 = vmatprep.subr.mxu0 0.0
        %1080 = vmatpush1.msra.mxu0 0.0
        %1081 = vmatprep.subr.mxu0 0.0
        %1082 = vmatpush1.msra.mxu0 0.0
        %1083 = vmatprep.subr.mxu0 0.0
        %1084 = vmatpush1.msra.mxu0 0.0
        %1085 = vmatprep.subr.mxu0 0.0
        %1086 = vmatpush1.msra.mxu0 0.0
        %1087 = vmatprep.subr.mxu0 0.0
        %1088 = vmatpush1.msra.mxu0 0.0
        %1089 = vmatprep.subr.mxu0 0.0
        %1090 = vmatpush1.msra.mxu0 0.0
        %1091 = vmatprep.subr.mxu0 0.0
        %1092 = vmatpush1.msra.mxu0 0.0
        %1093 = vmatprep.subr.mxu0 0.0
        %1094 = vmatpush1.msra.mxu0 0.0
        %1095 = vmatprep.subr.mxu0 0.0
        %1096 = vmatpush1.msra.mxu0 0.0
        %1097 = vmatprep.subr.mxu0 0.0
        %1098 = vmatpush1.msra.mxu0 0.0
        %1099 = vmatprep.subr.mxu0 0.0
        %1100 = vmatpush1.msra.mxu0 0.0
        %1101 = vmatprep.subr.mxu0 0.0
        %1102 = vmatpush1.msra.mxu0 0.0
        %1103 = vmatprep.subr.mxu0 0.0
        %1104 = vmatpush1.msra.mxu0 0.0
        %1105 = vmatprep.subr.mxu0 0.0
        %1106 = vmatpush1.msra.mxu0 0.0
        %1107 = vmatprep.subr.mxu0 0.0
        %1108 = vmatpush1.msra.mxu0 0.0
        %1109 = vmatprep.subr.mxu0 0.0
        %1110 = vmatpush1.msra.mxu0 0.0
        %1111 = vmatprep.subr.mxu0 0.0
        %1112 = vmatpush1.msra.mxu0 0.0
        %1113 = vmatprep.subr.mxu0 0.0
        %1114 = vmatpush1.msra.mxu0 0.0
        %1115 = vmatprep.subr.mxu0 0.0
        %1116 = vmatpush1.msra.mxu0 0.0
        %1117 = vmatprep.subr.mxu0 0.0
        %1118 = vmatpush1.msra.mxu0 0.0
        %1119 = vmatprep.subr.mxu0 0.0
        %1120 = vmatpush1.msra.mxu0 0.0
        %1121 = vmatprep.subr.mxu0 0.0
        %1122 = vmatpush1.msra.mxu0 0.0
        %1123 = vmatprep.subr.mxu0 0.0
        %1124 = vmatpush1.msra.mxu0 0.0
        %1125 = vmatprep.subr.mxu0 0.0
        %1126 = vmatpush1.msra.mxu0 0.0
        %1127 = vmatprep.subr.mxu0 0.0
        %1128 = vmatpush1.msra.mxu0 0.0
        %1129 = vmatprep.subr.mxu0 0.0
        %1130 = vmatpush1.msra.mxu0 0.0
        %1131 = vmatprep.subr.mxu0 0.0
        %1132 = vmatpush1.msra.mxu0 0.0
        %1133 = vmatprep.subr.mxu0 0.0
        %1134 = vmatpush1.msra.mxu0 0.0
        %1135 = vmatprep.mubr.f32.mxu0 0.0
        %1136 = vmatmul.mubr.f32.gmra.mrb[0].mxu0 %v989
        %v1137 = vpop.f32.mrb[0].mxu0
        %v1138 = vadd.f32 %v981, %v1137
        %v1139 = vpop.f32.mrb[0].mxu0
        %v1140 = vadd.f32 %v981, %v1139
        %1141 = vmatprep.mubr.f32.mxu0 0.0
        %1142 = vmatmul.mubr.f32.gmra.mrb[0].mxu0 %v992
        %v1143 = vpop.f32.mrb[0].mxu0
        %v1144 = vadd.f32 %v986, %v1143
        %v1145 = vpop.f32.mrb[0].mxu0
        %v1146 = vadd.f32 %v986, %v1145
        %1147 = vdwg.mxu0
        %1148 = vst [vmem:[%s296] sm:$0xff] %v1061
        %1149 = vst [vmem:[%s296 + $0x8] sm:$0xff] %v1063
        %1150 = vst [vmem:[%s296 + $0x10] sm:$0xff] %v1138
        %1151 = vst [vmem:[%s296 + $0x18] sm:$0xff] %v1140
        %1152 = vst [vmem:[%s296 + $0x20] sm:$0xff] %v1067
        %1153 = vst [vmem:[%s296 + $0x28] sm:$0xff] %v1069
        %1154 = vst [vmem:[%s296 + $0x30] sm:$0xff] %v1144
        %1155 = vst [vmem:[%s296 + $0x38] sm:$0xff] %v1146
        %s1156 = sand.u32 %s197, 1
        %s1157 = scalar_lea.sflag [#allocation3], %s1156
        %s1158 = sand.u32 %s197, 1
        %s1159 = smul.addr %s1158, 64
        %s1160 = scalar_lea.vmem [#allocation2], %s1159
        // Predicated region
        $region49: #{tpu_custom_call.1} parent=47 // pred_check
          %p1161 = pneg %p207
        $region50: #{tpu_custom_call.1} parent=47 // pred_check_branch
          %1163 = sbr.rel (%p1161) target = $region52
        $region51: #{tpu_custom_call.1} parent=47 // pred_region
          %s1164 = smul.u32 4, %s26
          %s1166 = ssub.s32 1024, 1024
          %1167 = vsyncadd %s1157, %s1166
          %s1168 = smul.addr %s25, 8
          %s1169 = sadd.s32 %s1164, %s1168
          %s1170 = smul.addr %s1169, 128
          %s1171 = scalar_lea.hbm %s7, %s1170
          %s1172 = sshll.u32 %s1160, 4
          %s1173 = int_to_ptr.vmem [resolvable:$true] %s1172
          %1178 = dma.vmem_to_hbm [thread:$0]  %s1173, 1024, %s1171, %s1157, 512, 512, 32
        $region52: #{tpu_custom_call.1} parent=47 // pred_fallthru
          _
      $region48: #{tpu_custom_call.1} parent=5 // pred_fallthru
        _
      %p1179 = scmp.le.s32.totalorder 2, %s16
      // Predicated region
      $region53: #{tpu_custom_call.1} parent=5 // pred_check
        %p1180 = pneg %p1179
      $region54: #{tpu_custom_call.1} parent=5 // pred_check_branch
        %1182 = sbr.rel (%p1180) target = $region56
      $region55: #{tpu_custom_call.1} parent=5 // pred_region
        %s1183 = ssub.s32 %s16, 2
        // Predicated region
        $region57: #{tpu_custom_call.1} parent=55 // pred_check
          %p1184 = pneg %p213
        $region58: #{tpu_custom_call.1} parent=55 // pred_check_branch
          %1186 = sbr.rel (%p1184) target = $region60
        $region59: #{tpu_custom_call.1} parent=55 // pred_region
          %s1187 = sand.u32 %s198, 1
          %s1188 = scalar_lea.sflag [#allocation3], %s1187
          %s1189 = sand.u32 %s198, 1
          %s1190 = smul.addr %s1189, 64
          %s1191 = scalar_lea.vmem [#allocation2], %s1190
          %1192 = dma.done %s1188, 1024
        $region60: #{tpu_custom_call.1} parent=55 // pred_fallthru
          _
      $region56: #{tpu_custom_call.1} parent=5 // pred_fallthru
        _
    $region6: #{tpu_custom_call.1} parent=1 // loop_footer
      %s20 = sadd.s32 1, %s16
    $region7: #{tpu_custom_call.1} parent=1 // loop_footer_branch
      %15 = sbr.rel target = $region3
    $region8: #{tpu_custom_call.1} parent=1 // loop_exit
      _
    %1193 = vsyncpa [#allocation3], 1
    %s1194 = scalar_lea.sflag [#allocation3], 1
    %1195 = vsyncpa %s1194, 1

</llo_original>
